<compile_context>
chip_gen: v6e
topology: v6e:2x2x1
jax: 0.10.0
libtpu: 0.0.40
codegen_flags: <defaults>
</compile_context>

<pallas_src>
import functools

import jax
import jax.numpy as jnp
from jax.experimental import pallas as pl
from jax.experimental.pallas import tpu as pltpu

_LANE = 128        # vreg lane width
_SUBLANE = 8       # f32 sublane count
_MAX_TILE_B = 512  # ~85% of HBM roofline at this tile size; multiple of 256 (v6e/v7x MXU M depth)


def _round_up(n, m):
    return ((n + m - 1) // m) * m


def _pad2d(a, rows, cols):
    r, c = a.shape
    return jnp.pad(a, ((0, rows - r), (0, cols - c)))


# -------------------- one-time parameter preparation (hoisted out of the forward path) --------

def prepare_params(params):
    """Pad weights/biases to lane-aligned shapes and cast weights to bf16.  Run ONCE.

    params = {'hidden': [(W, b), ...], 'output': (W, b)}, W is (in, out), b is (1, out).
    Returns (ops, dout): ops = tuple of (W_pad bf16, b_pad f32), dout = true class count.
    """
    w_list = [w for (w, _) in params["hidden"]] + [params["output"][0]]
    b_list = [b for (_, b) in params["hidden"]] + [params["output"][1]]
    dout = int(w_list[-1].shape[1])

    ops = []
    k_in = int(w_list[0].shape[0])            # layer-0 K stays un-padded (x streams un-padded)
    for w, b in zip(w_list, b_list):
        n_pad = _round_up(int(w.shape[1]), _LANE)
        wp = _pad2d(w, k_in, n_pad).astype(jnp.bfloat16)                  # MXU operand
        bp = _pad2d(jnp.asarray(b).reshape(1, -1), 1, n_pad).astype(jnp.float32)
        ops.append((wp, bp))
        k_in = n_pad                          # next layer consumes the padded activation width
    return tuple(ops), dout


# -------------------- fused Pallas kernel --------------------

def _make_fused_kernel(n_hidden, dout):
    """Kernel refs: x, (W_1, b_1), ..., (W_n, b_n), (W_out, b_out), o."""

    def kernel(x_ref, *refs):
        o_ref = refs[-1]
        h = x_ref[...]                                    # bf16 (tile_b, Din) — cast done host-side

        # hidden layers: relu(h @ W + b)
        for li in range(n_hidden):
            w = refs[2 * li][...]                         # bf16, grid-invariant -> VMEM-resident
            b = refs[2 * li + 1][...]                     # f32 (1, N_pad)
            lhs = h if h.dtype == jnp.bfloat16 else h.astype(jnp.bfloat16)
            z = jnp.dot(lhs, w, preferred_element_type=jnp.float32) + b
            h = jnp.maximum(z, 0.0)                       # relu in f32
            # TODO(synk): nn.Dropout(p=drop_p) in train mode — identity here (eval semantics).

        # output layer + numerically-stable log_softmax over the class dim
        w_o = refs[2 * n_hidden][...]
        b_o = refs[2 * n_hidden + 1][...]
        lhs = h if h.dtype == jnp.bfloat16 else h.astype(jnp.bfloat16)
        z = jnp.dot(lhs, w_o, preferred_element_type=jnp.float32) + b_o

        if dout < z.shape[-1]:
            # padded logit lanes must not participate in the max/sum reductions
            lane = jax.lax.broadcasted_iota(jnp.int32, z.shape, 1)
            z = jnp.where(lane < dout, z, jnp.float32(-1e30))

        m = jnp.max(z, axis=-1, keepdims=True)
        e = jnp.exp(z - m)
        s = jnp.sum(e, axis=-1, keepdims=True)
        logp = z - m - jnp.log(s)
        o_ref[...] = logp[:, :dout].astype(o_ref.dtype)   # store only the true class lanes

    return kernel


# -------------------- wrapper --------------------

def _pick_batch_tile(b):
    b8 = _round_up(b, _SUBLANE)
    if b8 <= 128:
        return b8                                     # toy batches: single grid step
    if b8 <= 2 * _MAX_TILE_B:
        # grid of exactly 2 -> both v7x TensorCores get a tile (harmless on 1-TC v5e/v6e)
        return _round_up((b8 + 1) // 2, _SUBLANE)
    return _MAX_TILE_B                                # large batches: 512-row tiles, parallel grid


def _vmem_limit_bytes(tile_b, din, dout, ops):
    """Conservative VMEM footprint: everything double-buffered + slack, capped below a v7x core."""
    w_bytes = sum(int(a.size) * a.dtype.itemsize for pair in ops for a in pair)
    io_bytes = tile_b * din * 2 + tile_b * dout * 4           # bf16 input tile + f32 output tile
    widest = max(int(w.shape[1]) for (w, _) in ops)
    act_bytes = 6 * tile_b * widest * 4                       # in-kernel f32 temporaries
    need = 2 * (w_bytes + io_bytes) + act_bytes + (4 << 20)   # + compiler scratch slack
    if need > (48 << 20):
        # NOTE: fully-VMEM-resident weights no longer fit a v7x core (64 MiB); a per-layer
        # K/N-tiled weight pipeline would be required past this point.
        raise NotImplementedError(
            f"FFNN too large for the fully VMEM-resident fused kernel (~{need >> 20} MiB needed)")
    # floor at the 32 MiB default so we never under-provision; never request a full v7x core.
    return int(min(max(need, 32 << 20), 48 << 20))


@functools.partial(jax.jit, static_argnames=("dout",))
def ffnn_forward(x, ops, *, dout):
    """x: (B, Din) f32.  ops: output of prepare_params.  Returns (B, dout) f32 log-probs."""
    B, din = x.shape
    n_hidden = len(ops) - 1

    tile_b = _pick_batch_tile(B)
    b_pad = _round_up(_round_up(B, _SUBLANE), tile_b)

    # batch pad + bf16 cast fused on the wrapper side (halves the input DMA stream);
    # the feature dim is NOT padded (full-last-dim block is legal, MXU pads K internally).
    x_p = _pad2d(x, b_pad, din).astype(jnp.bfloat16)

    in_specs = [pl.BlockSpec((tile_b, din), lambda i: (i, 0))]
    flat_ops = []
    for w, b in ops:
        # full-array, grid-invariant blocks: fetched once, stay VMEM-resident across the grid
        in_specs.append(pl.BlockSpec(w.shape, lambda i: (0, 0)))
        in_specs.append(pl.BlockSpec(b.shape, lambda i: (0, 0)))
        flat_ops += [w, b]

    out_padded = pl.pallas_call(
        _make_fused_kernel(n_hidden, dout),
        out_shape=jax.ShapeDtypeStruct((b_pad, dout), jnp.float32),
        grid=(b_pad // tile_b,),
        in_specs=in_specs,
        out_specs=pl.BlockSpec((tile_b, dout), lambda i: (i, 0)),
        compiler_params=pltpu.CompilerParams(
            dimension_semantics=("parallel",),
            vmem_limit_bytes=_vmem_limit_bytes(tile_b, din, dout, ops),
        ),
    )(x_p, *flat_ops)

    return out_padded if b_pad == B else out_padded[:B]


# -------------------- deterministic parameter init --------------------

def init_params(key, input_size, output_size, hidden_layers):
    params = {"hidden": [], "output": None}
    dims = [input_size] + list(hidden_layers)
    for i in range(len(hidden_layers)):
        key, k1, k2 = jax.random.split(key, 3)
        fan_in, fan_out = dims[i], dims[i + 1]
        bound = 1.0 / jnp.sqrt(fan_in)
        w = jax.random.uniform(k1, (fan_in, fan_out), jnp.float32, -bound, bound)
        b = jax.random.uniform(k2, (1, fan_out), jnp.float32, -bound, bound)
        params["hidden"].append((w, b))
    key, k1, k2 = jax.random.split(key, 3)
    fan_in = hidden_layers[-1]
    bound = 1.0 / jnp.sqrt(fan_in)
    w = jax.random.uniform(k1, (fan_in, output_size), jnp.float32, -bound, bound)
    b = jax.random.uniform(k2, (1, output_size), jnp.float32, -bound, bound)
    params["output"] = (w, b)
    return params


# -------------------- main --------------------

if __name__ == "__main__":
    key = jax.random.PRNGKey(0)
    batch, input_size, output_size = 8, 32, 10
    hidden_layers = [64, 32]

    key, kx = jax.random.split(key)
    x = jax.random.normal(kx, (batch, input_size), jnp.float32)
    params = init_params(key, input_size, output_size, hidden_layers)

    # One-time pad + bf16 cast (hoisted out of the per-call path).
    ops, dout = prepare_params(params)

    out = ffnn_forward(x, ops, dout=dout)
    jax.block_until_ready(out)

    assert out.shape == (batch, output_size)
    # sanity: log_softmax rows exponentiate-sum to 1 (identity holds even with bf16 matmul operands)
    row_sums = jnp.sum(jnp.exp(out), axis=1)
    assert bool(jnp.all(jnp.abs(row_sums - 1.0) < 1e-3)), row_sums
    assert bool(jnp.all(jnp.isfinite(out)))

    print("KERNEL_OK")
</pallas_src>

<mosaic_0001>
module attributes {stable_mosaic.version = 11 : i64} {
  func.func @kernel(%arg0: i32, %arg1: memref<8x32xbf16, #tpu.memory_space<vmem>>, %arg2: memref<32x128xbf16, #tpu.memory_space<vmem>>, %arg3: memref<1x128xf32, #tpu.memory_space<vmem>>, %arg4: memref<128x128xbf16, #tpu.memory_space<vmem>>, %arg5: memref<1x128xf32, #tpu.memory_space<vmem>>, %arg6: memref<128x128xbf16, #tpu.memory_space<vmem>>, %arg7: memref<1x128xf32, #tpu.memory_space<vmem>>, %arg8: memref<8x10xf32, #tpu.memory_space<vmem>>) attributes {dimension_semantics = [#tpu.dimension_semantics<parallel>], iteration_bounds = array<i64: 1>, scalar_prefetch = 0 : i64, scratch_operands = 0 : i64, tpu.core_type = #tpu.core_type<tc>, window_params = [{transform_indices = @transform_0, window_bounds = array<i64: 8, 32>}, {pipeline_mode = #tpu.pipeline_mode<synchronous>, transform_indices = @transform_1, window_bounds = array<i64: 32, 128>}, {pipeline_mode = #tpu.pipeline_mode<synchronous>, transform_indices = @transform_2, window_bounds = array<i64: 1, 128>}, {pipeline_mode = #tpu.pipeline_mode<synchronous>, transform_indices = @transform_3, window_bounds = array<i64: 128, 128>}, {pipeline_mode = #tpu.pipeline_mode<synchronous>, transform_indices = @transform_4, window_bounds = array<i64: 1, 128>}, {pipeline_mode = #tpu.pipeline_mode<synchronous>, transform_indices = @transform_5, window_bounds = array<i64: 128, 128>}, {pipeline_mode = #tpu.pipeline_mode<synchronous>, transform_indices = @transform_6, window_bounds = array<i64: 1, 128>}, {transform_indices = @transform_7, window_bounds = array<i64: 8, 10>}]} {
    %c0 = arith.constant 0 : index
    %c0_0 = arith.constant 0 : index
    %0 = vector.load %arg1[%c0, %c0_0] : memref<8x32xbf16, #tpu.memory_space<vmem>>, vector<8x32xbf16>
    %c0_1 = arith.constant 0 : index
    %c0_2 = arith.constant 0 : index
    %1 = vector.load %arg2[%c0_1, %c0_2] : memref<32x128xbf16, #tpu.memory_space<vmem>>, vector<32x128xbf16>
    %c0_3 = arith.constant 0 : index
    %c0_4 = arith.constant 0 : index
    %2 = vector.load %arg3[%c0_3, %c0_4] : memref<1x128xf32, #tpu.memory_space<vmem>>, vector<1x128xf32>
    %cst = arith.constant dense<0.000000e+00> : vector<8x128xf32>
    %3 = tpu.matmul %0, %1, %cst {dimension_numbers = #tpu.dot_dimension_numbers<[1], [0], [0], [1], [0, 0, 1, 1], [], []>} : vector<8x32xbf16>, vector<32x128xbf16>, vector<8x128xf32> -> vector<8x128xf32>
    %4 = vector.broadcast %2 : vector<1x128xf32> to vector<8x128xf32>
    %5 = arith.addf %3, %4 : vector<8x128xf32>
    %cst_5 = arith.constant 0.000000e+00 : f32
    %6 = vector.broadcast %cst_5 : f32 to vector<8x128xf32>
    %7 = arith.maximumf %5, %6 : vector<8x128xf32>
    %c0_6 = arith.constant 0 : index
    %c0_7 = arith.constant 0 : index
    %8 = vector.load %arg4[%c0_6, %c0_7] : memref<128x128xbf16, #tpu.memory_space<vmem>>, vector<128x128xbf16>
    %c0_8 = arith.constant 0 : index
    %c0_9 = arith.constant 0 : index
    %9 = vector.load %arg5[%c0_8, %c0_9] : memref<1x128xf32, #tpu.memory_space<vmem>>, vector<1x128xf32>
    %10 = arith.truncf %7 : vector<8x128xf32> to vector<8x128xbf16>
    %cst_10 = arith.constant dense<0.000000e+00> : vector<8x128xf32>
    %11 = tpu.matmul %10, %8, %cst_10 {dimension_numbers = #tpu.dot_dimension_numbers<[1], [0], [0], [1], [0, 0, 1, 1], [], []>} : vector<8x128xbf16>, vector<128x128xbf16>, vector<8x128xf32> -> vector<8x128xf32>
    %12 = vector.broadcast %9 : vector<1x128xf32> to vector<8x128xf32>
    %13 = arith.addf %11, %12 : vector<8x128xf32>
    %cst_11 = arith.constant 0.000000e+00 : f32
    %14 = vector.broadcast %cst_11 : f32 to vector<8x128xf32>
    %15 = arith.maximumf %13, %14 : vector<8x128xf32>
    %c0_12 = arith.constant 0 : index
    %c0_13 = arith.constant 0 : index
    %16 = vector.load %arg6[%c0_12, %c0_13] : memref<128x128xbf16, #tpu.memory_space<vmem>>, vector<128x128xbf16>
    %c0_14 = arith.constant 0 : index
    %c0_15 = arith.constant 0 : index
    %17 = vector.load %arg7[%c0_14, %c0_15] : memref<1x128xf32, #tpu.memory_space<vmem>>, vector<1x128xf32>
    %18 = arith.truncf %15 : vector<8x128xf32> to vector<8x128xbf16>
    %cst_16 = arith.constant dense<0.000000e+00> : vector<8x128xf32>
    %19 = tpu.matmul %18, %16, %cst_16 {dimension_numbers = #tpu.dot_dimension_numbers<[1], [0], [0], [1], [0, 0, 1, 1], [], []>} : vector<8x128xbf16>, vector<128x128xbf16>, vector<8x128xf32> -> vector<8x128xf32>
    %20 = vector.broadcast %17 : vector<1x128xf32> to vector<8x128xf32>
    %21 = arith.addf %19, %20 : vector<8x128xf32>
    %22 = tpu.iota {dimensions = array<i32: 1>} : vector<8x128xi32>
    %c10_i32 = arith.constant 10 : i32
    %23 = vector.broadcast %c10_i32 : i32 to vector<8x128xi32>
    %24 = arith.cmpi slt, %22, %23 : vector<8x128xi32>
    %cst_17 = arith.constant -1.000000e+30 : f32
    %25 = vector.broadcast %cst_17 : f32 to vector<8x128xf32>
    %26 = arith.select %24, %21, %25 : vector<8x128xi1>, vector<8x128xf32>
    %cst_18 = arith.constant dense<0xFF800000> : vector<8xf32>
    %27 = vector.multi_reduction <maximumf>, %26, %cst_18 [1] : vector<8x128xf32> to vector<8xf32>
    %28 = vector.shape_cast %27 : vector<8xf32> to vector<8x1xf32>
    %29 = vector.broadcast %28 : vector<8x1xf32> to vector<8x128xf32>
    %30 = arith.subf %26, %29 : vector<8x128xf32>
    %31 = math.exp %30 : vector<8x128xf32>
    %cst_19 = arith.constant dense<0.000000e+00> : vector<8xf32>
    %32 = vector.multi_reduction <add>, %31, %cst_19 [1] : vector<8x128xf32> to vector<8xf32>
    %33 = vector.shape_cast %32 : vector<8xf32> to vector<8x1xf32>
    %34 = vector.broadcast %28 : vector<8x1xf32> to vector<8x128xf32>
    %35 = arith.subf %26, %34 : vector<8x128xf32>
    %36 = math.log %33 : vector<8x1xf32>
    %37 = vector.broadcast %36 : vector<8x1xf32> to vector<8x128xf32>
    %38 = arith.subf %35, %37 : vector<8x128xf32>
    %39 = vector.extract_strided_slice %38 {offsets = [0, 0], sizes = [8, 10], strides = [1, 1]} : vector<8x128xf32> to vector<8x10xf32>
    %c0_20 = arith.constant 0 : index
    %c0_21 = arith.constant 0 : index
    %40 = vector.load %arg8[%c0_20, %c0_21] : memref<8x10xf32, #tpu.memory_space<vmem>>, vector<8x10xf32>
    tpu.vector_store %arg8[%c0_20, %c0_21], %39 {strides = array<i32>} : memref<8x10xf32, #tpu.memory_space<vmem>>, vector<8x10xf32>,
    return
  }
  func.func @transform_0(%arg0: i32) -> (i32, i32) {
    %c0_i32 = arith.constant 0 : i32
    %c0_i32_0 = arith.constant 0 : i32
    return %arg0, %c0_i32 : i32, i32
  }
  func.func @transform_1(%arg0: i32) -> (i32, i32) {
    %c0_i32 = arith.constant 0 : i32
    %c0_i32_0 = arith.constant 0 : i32
    %c0_i32_1 = arith.constant 0 : i32
    return %c0_i32, %c0_i32_0 : i32, i32
  }
  func.func @transform_2(%arg0: i32) -> (i32, i32) {
    %c0_i32 = arith.constant 0 : i32
    %c0_i32_0 = arith.constant 0 : i32
    %c0_i32_1 = arith.constant 0 : i32
    return %c0_i32, %c0_i32_0 : i32, i32
  }
  func.func @transform_3(%arg0: i32) -> (i32, i32) {
    %c0_i32 = arith.constant 0 : i32
    %c0_i32_0 = arith.constant 0 : i32
    %c0_i32_1 = arith.constant 0 : i32
    return %c0_i32, %c0_i32_0 : i32, i32
  }
  func.func @transform_4(%arg0: i32) -> (i32, i32) {
    %c0_i32 = arith.constant 0 : i32
    %c0_i32_0 = arith.constant 0 : i32
    %c0_i32_1 = arith.constant 0 : i32
    return %c0_i32, %c0_i32_0 : i32, i32
  }
  func.func @transform_5(%arg0: i32) -> (i32, i32) {
    %c0_i32 = arith.constant 0 : i32
    %c0_i32_0 = arith.constant 0 : i32
    %c0_i32_1 = arith.constant 0 : i32
    return %c0_i32, %c0_i32_0 : i32, i32
  }
  func.func @transform_6(%arg0: i32) -> (i32, i32) {
    %c0_i32 = arith.constant 0 : i32
    %c0_i32_0 = arith.constant 0 : i32
    %c0_i32_1 = arith.constant 0 : i32
    return %c0_i32, %c0_i32_0 : i32, i32
  }
  func.func @transform_7(%arg0: i32) -> (i32, i32) {
    %c0_i32 = arith.constant 0 : i32
    %c0_i32_0 = arith.constant 0 : i32
    return %arg0, %c0_i32 : i32, i32
  }
}

</mosaic_0001>

<llo_original>
// kernel: ffnn_forward.1
$region0: #{ffnn_forward.1}
  #allocation0 [shape = 'u32[]', space=smem, size = 0x4, offset = 0x4, fixed_abs, tag = 'smem constant byte address 0x4 - core index']
  #allocation1 [shape = 'u32[144,128]{1,0:T(1,128)}', space=vmem, size = 0x12000, scoped, tag = 'internal scratch']
  %s0 = inlined_call_operand.vmem [shape: bf16[8,32], index: 0, kind: input, shape index: {}]
  %s1 = inlined_call_operand.hbm [shape: bf16[32,128], index: 1, kind: input, shape index: {}]
  %s2 = inlined_call_operand.vmem [shape: f32[1,128], index: 2, kind: input, shape index: {}]
  %s3 = inlined_call_operand.hbm [shape: bf16[128,128], index: 3, kind: input, shape index: {}]
  %s4 = inlined_call_operand.vmem [shape: f32[1,128], index: 4, kind: input, shape index: {}]
  %s5 = inlined_call_operand.hbm [shape: bf16[128,128], index: 5, kind: input, shape index: {}]
  %s6 = inlined_call_operand.vmem [shape: f32[1,128], index: 6, kind: input, shape index: {}]
  %s7 = inlined_call_operand.hbm [shape: f32[8,10], index: 7, kind: output, shape index: {}]
  %s8 = sld [smem:[#allocation0]]
  $region50: #{ffnn_forward.1} parent=0
    _
  %s10 = ssub.s32 1, %s8
  %s11 = scalar_select 0, %s10, %s8
  $region1: #{ffnn_forward.1} parent=0
    #allocation2 [shape = 'u8[8192]{0}', space=vmem, size = 0x2000, scoped, tag = 'input window, operand 1, single buffered']
    #allocation3 [shape = 's32[1]{0}', space=sflag, size = 0x4, scoped, tag = 'scoped memory for ffnn_forward.1']
    #allocation4 [shape = 's32[1]{0}', space=sflag, size = 0x4, scoped, tag = 'scoped memory for ffnn_forward.1']
    #allocation5 [shape = 'u8[32768]{0}', space=vmem, size = 0x8000, scoped, tag = 'input window, operand 3, single buffered']
    #allocation6 [shape = 's32[1]{0}', space=sflag, size = 0x4, scoped, tag = 'scoped memory for ffnn_forward.1']
    #allocation7 [shape = 'u8[32768]{0}', space=vmem, size = 0x8000, scoped, tag = 'input window, operand 5, single buffered']
    #allocation8 [shape = 'u8[4096]{0}', space=vmem, size = 0x1000, scoped, tag = 'output window, operand 0, single buffered']
    %12 = vsyncpa [#allocation3], 0
    %13 = vsyncpa [#allocation6], 0
    %14 = vsyncpa [#allocation4], 0
    // Predicated region
    $region2: #{ffnn_forward.1} parent=1 // pred_check
      _
    $region3: #{ffnn_forward.1} parent=1 // pred_check_branch
      %16 = sbr.rel (0) target = $region5
    $region4: #{ffnn_forward.1} parent=1 // pred_region
      _
    $region5: #{ffnn_forward.1} parent=1 // pred_fallthru
      _
    // Predicated region
    $region6: #{ffnn_forward.1} parent=1 // pred_check
      _
    $region7: #{ffnn_forward.1} parent=1 // pred_check_branch
      %18 = sbr.rel (0) target = $region9
    $region8: #{ffnn_forward.1} parent=1 // pred_region
      %s20 = ssub.s32 256, 256
      %21 = vsyncadd [#allocation3], %s20
      %s22 = sshll.u32 [#allocation2], 4
      %s23 = int_to_ptr.vmem [resolvable:$true] %s22
      %28 = dma.hbm_to_vmem [thread:$0]  %s1, 256, %s23, [#allocation3], 64, 64, 4
    $region9: #{ffnn_forward.1} parent=1 // pred_fallthru
      _
    // Predicated region
    $region10: #{ffnn_forward.1} parent=1 // pred_check
      _
    $region11: #{ffnn_forward.1} parent=1 // pred_check_branch
      %30 = sbr.rel (0) target = $region13
    $region12: #{ffnn_forward.1} parent=1 // pred_region
      _
    $region13: #{ffnn_forward.1} parent=1 // pred_fallthru
      _
    // Predicated region
    $region14: #{ffnn_forward.1} parent=1 // pred_check
      _
    $region15: #{ffnn_forward.1} parent=1 // pred_check_branch
      %32 = sbr.rel (0) target = $region17
    $region16: #{ffnn_forward.1} parent=1 // pred_region
      %s34 = ssub.s32 1024, 1024
      %35 = vsyncadd [#allocation6], %s34
      %s36 = sshll.u32 [#allocation5], 4
      %s37 = int_to_ptr.vmem [resolvable:$true] %s36
      %42 = dma.hbm_to_vmem [thread:$0]  %s3, 1024, %s37, [#allocation6], 64, 64, 4
    $region17: #{ffnn_forward.1} parent=1 // pred_fallthru
      _
    // Predicated region
    $region18: #{ffnn_forward.1} parent=1 // pred_check
      _
    $region19: #{ffnn_forward.1} parent=1 // pred_check_branch
      %44 = sbr.rel (0) target = $region21
    $region20: #{ffnn_forward.1} parent=1 // pred_region
      _
    $region21: #{ffnn_forward.1} parent=1 // pred_fallthru
      _
    // Predicated region
    $region22: #{ffnn_forward.1} parent=1 // pred_check
      _
    $region23: #{ffnn_forward.1} parent=1 // pred_check_branch
      %46 = sbr.rel (0) target = $region25
    $region24: #{ffnn_forward.1} parent=1 // pred_region
      %s48 = ssub.s32 1024, 1024
      %49 = vsyncadd [#allocation6], %s48
      %s50 = sshll.u32 [#allocation7], 4
      %s51 = int_to_ptr.vmem [resolvable:$true] %s50
      %56 = dma.hbm_to_vmem [thread:$0]  %s5, 1024, %s51, [#allocation6], 64, 64, 4
    $region25: #{ffnn_forward.1} parent=1 // pred_fallthru
      _
    // Predicated region
    $region26: #{ffnn_forward.1} parent=1 // pred_check
      _
    $region27: #{ffnn_forward.1} parent=1 // pred_check_branch
      %58 = sbr.rel (0) target = $region29
    $region28: #{ffnn_forward.1} parent=1 // pred_region
      _
    $region29: #{ffnn_forward.1} parent=1 // pred_fallthru
      _
    // Predicated region
    $region30: #{ffnn_forward.1} parent=1 // pred_check
      _
    $region31: #{ffnn_forward.1} parent=1 // pred_check_branch
      %60 = sbr.rel (0) target = $region33
    $region32: #{ffnn_forward.1} parent=1 // pred_region
      %61 = dma.done [#allocation3], 256
    $region33: #{ffnn_forward.1} parent=1 // pred_fallthru
      _
    // Predicated region
    $region34: #{ffnn_forward.1} parent=1 // pred_check
      _
    $region35: #{ffnn_forward.1} parent=1 // pred_check_branch
      %63 = sbr.rel (0) target = $region37
    $region36: #{ffnn_forward.1} parent=1 // pred_region
      %64 = dma.done [#allocation6], 1024
    $region37: #{ffnn_forward.1} parent=1 // pred_fallthru
      _
    // Predicated region
    $region38: #{ffnn_forward.1} parent=1 // pred_check
      _
    $region39: #{ffnn_forward.1} parent=1 // pred_check_branch
      %66 = sbr.rel (0) target = $region41
    $region40: #{ffnn_forward.1} parent=1 // pred_region
      %67 = dma.done [#allocation6], 1024
    $region41: #{ffnn_forward.1} parent=1 // pred_fallthru
      _
    %v69 = vld [vmem:[%s0] sm:$0xf]
    %v70 = vld [vmem:[#allocation2] sm:$0xf]
    %v71 = vld [vmem:[#allocation2 + $0x4] sm:$0xf]
    %v72 = vld [vmem:[#allocation2 + $0x8] sm:$0xf]
    %v73 = vld [vmem:[#allocation2 + $0xc] sm:$0xf]
    %v74 = vld [vmem:[%s2] sm:$0x1]
    %v76 = vlaneseq
    %v77 = vshrl.u32 %v76, 7
    %v78 = vsub.s32 0, %v77
    %v79 = vrot.slane %v74, %v78
    %v85 = vunpack.c.l.b16 %v70
    %v86 = vunpack.c.l.b16 %v71
    %v87 = vunpack.c.l.b16 %v72
    %v88 = vunpack.c.l.b16 %v73
    %v89 = vpack.c.b16 %v86, %v85
    %v90 = vpack.c.b16 %v88, %v87
    %vm93 = vcmask 261120
    %v95 = vsel %vm93, %v69, 0
    %97 = vmatprep.subr.bf16.mxu0 0
    %98 = vmatpush1.bf16.msra.mxu0 0
    %99 = vmatprep.subr.bf16.mxu0 0
    %100 = vmatpush1.bf16.msra.mxu0 0
    %101 = vmatprep.subr.bf16.mxu0 0
    %102 = vmatpush1.bf16.msra.mxu0 0
    %103 = vmatprep.subr.bf16.mxu0 0
    %104 = vmatpush1.bf16.msra.mxu0 0
    %105 = vmatprep.subr.bf16.mxu0 0
    %106 = vmatpush1.bf16.msra.mxu0 0
    %107 = vmatprep.subr.bf16.mxu0 0
    %108 = vmatpush1.bf16.msra.mxu0 0
    %109 = vmatprep.subr.bf16.mxu0 0
    %110 = vmatpush1.bf16.msra.mxu0 %v90
    %111 = vmatprep.subr.bf16.mxu0 0
    %112 = vmatpush1.bf16.msra.mxu0 %v89
    %113 = vmatprep.subr.bf16.mxu0 0
    %114 = vmatpush2.bf16.msra.mxu0 0
    %115 = vmatprep.subr.bf16.mxu0 0
    %116 = vmatpush2.bf16.msra.mxu0 0
    %117 = vmatprep.subr.bf16.mxu0 0
    %118 = vmatpush2.bf16.msra.mxu0 0
    %119 = vmatprep.subr.bf16.mxu0 0
    %120 = vmatpush2.bf16.msra.mxu0 0
    %121 = vmatprep.subr.bf16.mxu0 0
    %122 = vmatpush2.bf16.msra.mxu0 0
    %123 = vmatprep.subr.bf16.mxu0 0
    %124 = vmatpush2.bf16.msra.mxu0 0
    %125 = vmatprep.subr.bf16.mxu0 0
    %126 = vmatpush2.bf16.msra.mxu0 0
    %127 = vmatprep.subr.bf16.mxu0 0
    %128 = vmatpush2.bf16.msra.mxu0 0
    %129 = vmatprep.mubr.bf16.mxu0 0
    %130 = vmatmul.mubr.bf16.gmra.mxu0 %v95
    %v131 = vpop.f32.mrf.mxu0
    %v132 = vadd.f32 %v79, %v131
    %v133 = vpop.f32.mrf.mxu0
    %v134 = vpop.f32.mrf.mxu0
    %v135 = vpop.f32.mrf.mxu0
    %136 = vdwg.mxu0
    %v137 = vmax.f32 %v132, 0.0
    %v138 = vld [vmem:[#allocation5] sm:$0xf]
    %v139 = vld [vmem:[#allocation5 + $0x4] sm:$0xf]
    %v140 = vld [vmem:[#allocation5 + $0x8] sm:$0xf]
    %v141 = vld [vmem:[#allocation5 + $0xc] sm:$0xf]
    %v142 = vld [vmem:[#allocation5 + $0x10] sm:$0xf]
    %v143 = vld [vmem:[#allocation5 + $0x14] sm:$0xf]
    %v144 = vld [vmem:[#allocation5 + $0x18] sm:$0xf]
    %v145 = vld [vmem:[#allocation5 + $0x1c] sm:$0xf]
    %v146 = vld [vmem:[#allocation5 + $0x20] sm:$0xf]
    %v147 = vld [vmem:[#allocation5 + $0x24] sm:$0xf]
    %v148 = vld [vmem:[#allocation5 + $0x28] sm:$0xf]
    %v149 = vld [vmem:[#allocation5 + $0x2c] sm:$0xf]
    %v150 = vld [vmem:[#allocation5 + $0x30] sm:$0xf]
    %v151 = vld [vmem:[#allocation5 + $0x34] sm:$0xf]
    %v152 = vld [vmem:[#allocation5 + $0x38] sm:$0xf]
    %v153 = vld [vmem:[#allocation5 + $0x3c] sm:$0xf]
    %v154 = vld [vmem:[%s4] sm:$0x1]
    %v155 = vpack.c.bf16 %v137, %v137
    %v157 = vlaneseq
    %v158 = vshrl.u32 %v157, 7
    %v159 = vsub.s32 0, %v158
    %v160 = vrot.slane %v154, %v159
    %v178 = vunpack.c.l.b16 %v138
    %v179 = vunpack.c.l.b16 %v139
    %v180 = vunpack.c.l.b16 %v140
    %v181 = vunpack.c.l.b16 %v141
    %v182 = vunpack.c.l.b16 %v142
    %v183 = vunpack.c.l.b16 %v143
    %v184 = vunpack.c.l.b16 %v144
    %v185 = vunpack.c.l.b16 %v145
    %v186 = vunpack.c.l.b16 %v146
    %v187 = vunpack.c.l.b16 %v147
    %v188 = vunpack.c.l.b16 %v148
    %v189 = vunpack.c.l.b16 %v149
    %v190 = vunpack.c.l.b16 %v150
    %v191 = vunpack.c.l.b16 %v151
    %v192 = vunpack.c.l.b16 %v152
    %v193 = vunpack.c.l.b16 %v153
    %v194 = vpack.c.b16 %v179, %v178
    %v195 = vpack.c.b16 %v181, %v180
    %v196 = vpack.c.b16 %v183, %v182
    %v197 = vpack.c.b16 %v185, %v184
    %v198 = vpack.c.b16 %v187, %v186
    %v199 = vpack.c.b16 %v189, %v188
    %v200 = vpack.c.b16 %v191, %v190
    %v201 = vpack.c.b16 %v193, %v192
    %210 = vmatprep.subr.bf16.mxu0 0
    %211 = vmatpush1.bf16.msra.mxu0 %v201
    %212 = vmatprep.subr.bf16.mxu0 0
    %213 = vmatpush1.bf16.msra.mxu0 %v200
    %214 = vmatprep.subr.bf16.mxu0 0
    %215 = vmatpush1.bf16.msra.mxu0 %v199
    %216 = vmatprep.subr.bf16.mxu0 0
    %217 = vmatpush1.bf16.msra.mxu0 %v198
    %218 = vmatprep.subr.bf16.mxu0 0
    %219 = vmatpush1.bf16.msra.mxu0 %v197
    %220 = vmatprep.subr.bf16.mxu0 0
    %221 = vmatpush1.bf16.msra.mxu0 %v196
    %222 = vmatprep.subr.bf16.mxu0 0
    %223 = vmatpush1.bf16.msra.mxu0 %v195
    %224 = vmatprep.subr.bf16.mxu0 0
    %225 = vmatpush1.bf16.msra.mxu0 %v194
    %226 = vmatprep.subr.bf16.mxu0 0
    %227 = vmatpush2.bf16.msra.mxu0 0
    %228 = vmatprep.subr.bf16.mxu0 0
    %229 = vmatpush2.bf16.msra.mxu0 0
    %230 = vmatprep.subr.bf16.mxu0 0
    %231 = vmatpush2.bf16.msra.mxu0 0
    %232 = vmatprep.subr.bf16.mxu0 0
    %233 = vmatpush2.bf16.msra.mxu0 0
    %234 = vmatprep.subr.bf16.mxu0 0
    %235 = vmatpush2.bf16.msra.mxu0 0
    %236 = vmatprep.subr.bf16.mxu0 0
    %237 = vmatpush2.bf16.msra.mxu0 0
    %238 = vmatprep.subr.bf16.mxu0 0
    %239 = vmatpush2.bf16.msra.mxu0 0
    %240 = vmatprep.subr.bf16.mxu0 0
    %241 = vmatpush2.bf16.msra.mxu0 0
    %242 = vmatprep.mubr.bf16.mxu0 0
    %243 = vmatmul.mubr.bf16.gmra.mxu0 %v155
    %v244 = vpop.f32.mrf.mxu0
    %v245 = vadd.f32 %v160, %v244
    %v246 = vpop.f32.mrf.mxu0
    %v247 = vpop.f32.mrf.mxu0
    %v248 = vpop.f32.mrf.mxu0
    %249 = vdwg.mxu0
    %v250 = vmax.f32 %v245, 0.0
    %v251 = vld [vmem:[#allocation7] sm:$0xf]
    %v252 = vld [vmem:[#allocation7 + $0x4] sm:$0xf]
    %v253 = vld [vmem:[#allocation7 + $0x8] sm:$0xf]
    %v254 = vld [vmem:[#allocation7 + $0xc] sm:$0xf]
    %v255 = vld [vmem:[#allocation7 + $0x10] sm:$0xf]
    %v256 = vld [vmem:[#allocation7 + $0x14] sm:$0xf]
    %v257 = vld [vmem:[#allocation7 + $0x18] sm:$0xf]
    %v258 = vld [vmem:[#allocation7 + $0x1c] sm:$0xf]
    %v259 = vld [vmem:[#allocation7 + $0x20] sm:$0xf]
    %v260 = vld [vmem:[#allocation7 + $0x24] sm:$0xf]
    %v261 = vld [vmem:[#allocation7 + $0x28] sm:$0xf]
    %v262 = vld [vmem:[#allocation7 + $0x2c] sm:$0xf]
    %v263 = vld [vmem:[#allocation7 + $0x30] sm:$0xf]
    %v264 = vld [vmem:[#allocation7 + $0x34] sm:$0xf]
    %v265 = vld [vmem:[#allocation7 + $0x38] sm:$0xf]
    %v266 = vld [vmem:[#allocation7 + $0x3c] sm:$0xf]
    %v267 = vld [vmem:[%s6] sm:$0x1]
    %v268 = vpack.c.bf16 %v250, %v250
    %v270 = vlaneseq
    %v271 = vshrl.u32 %v270, 7
    %v272 = vsub.s32 0, %v271
    %v273 = vrot.slane %v267, %v272
    %v291 = vunpack.c.l.b16 %v251
    %v292 = vunpack.c.l.b16 %v252
    %v293 = vunpack.c.l.b16 %v253
    %v294 = vunpack.c.l.b16 %v254
    %v295 = vunpack.c.l.b16 %v255
    %v296 = vunpack.c.l.b16 %v256
    %v297 = vunpack.c.l.b16 %v257
    %v298 = vunpack.c.l.b16 %v258
    %v299 = vunpack.c.l.b16 %v259
    %v300 = vunpack.c.l.b16 %v260
    %v301 = vunpack.c.l.b16 %v261
    %v302 = vunpack.c.l.b16 %v262
    %v303 = vunpack.c.l.b16 %v263
    %v304 = vunpack.c.l.b16 %v264
    %v305 = vunpack.c.l.b16 %v265
    %v306 = vunpack.c.l.b16 %v266
    %v307 = vpack.c.b16 %v292, %v291
    %v308 = vpack.c.b16 %v294, %v293
    %v309 = vpack.c.b16 %v296, %v295
    %v310 = vpack.c.b16 %v298, %v297
    %v311 = vpack.c.b16 %v300, %v299
    %v312 = vpack.c.b16 %v302, %v301
    %v313 = vpack.c.b16 %v304, %v303
    %v314 = vpack.c.b16 %v306, %v305
    %323 = vmatprep.subr.bf16.mxu0 0
    %324 = vmatpush1.bf16.msra.mxu0 %v314
    %325 = vmatprep.subr.bf16.mxu0 0
    %326 = vmatpush1.bf16.msra.mxu0 %v313
    %327 = vmatprep.subr.bf16.mxu0 0
    %328 = vmatpush1.bf16.msra.mxu0 %v312
    %329 = vmatprep.subr.bf16.mxu0 0
    %330 = vmatpush1.bf16.msra.mxu0 %v311
    %331 = vmatprep.subr.bf16.mxu0 0
    %332 = vmatpush1.bf16.msra.mxu0 %v310
    %333 = vmatprep.subr.bf16.mxu0 0
    %334 = vmatpush1.bf16.msra.mxu0 %v309
    %335 = vmatprep.subr.bf16.mxu0 0
    %336 = vmatpush1.bf16.msra.mxu0 %v308
    %337 = vmatprep.subr.bf16.mxu0 0
    %338 = vmatpush1.bf16.msra.mxu0 %v307
    %339 = vmatprep.subr.bf16.mxu0 0
    %340 = vmatpush2.bf16.msra.mxu0 0
    %341 = vmatprep.subr.bf16.mxu0 0
    %342 = vmatpush2.bf16.msra.mxu0 0
    %343 = vmatprep.subr.bf16.mxu0 0
    %344 = vmatpush2.bf16.msra.mxu0 0
    %345 = vmatprep.subr.bf16.mxu0 0
    %346 = vmatpush2.bf16.msra.mxu0 0
    %347 = vmatprep.subr.bf16.mxu0 0
    %348 = vmatpush2.bf16.msra.mxu0 0
    %349 = vmatprep.subr.bf16.mxu0 0
    %350 = vmatpush2.bf16.msra.mxu0 0
    %351 = vmatprep.subr.bf16.mxu0 0
    %352 = vmatpush2.bf16.msra.mxu0 0
    %353 = vmatprep.subr.bf16.mxu0 0
    %354 = vmatpush2.bf16.msra.mxu0 0
    %355 = vmatprep.mubr.bf16.mxu0 0
    %356 = vmatmul.mubr.bf16.gmra.mxu0 %v268
    %v357 = vpop.f32.mrf.mxu0
    %v358 = vadd.f32 %v273, %v357
    %v359 = vpop.f32.mrf.mxu0
    %v360 = vpop.f32.mrf.mxu0
    %v361 = vpop.f32.mrf.mxu0
    %362 = vdwg.mxu0
    %v363 = vlaneseq
    %v364 = vand.u32 %v363, 127
    %vm365 = vcmp.lt.s32.totalorder %v364, 10
    %v366 = vsel %vm365, %v358, -1e+30
    %367 = vmax.xlane.f32.xlu0 %v366
    %v368 = vpop.xlane.xlu0 %367
    %v369 = vsub.f32 %v366, %v368
    %v370 = vmul.f32 %v369, 1.442695
    %v371 = vpow.pop %v370
    %372 = vadd.xlane.f32.xlu0 %v371
    %v373 = vpop.xlane.xlu0 %372
    %v374 = vlog2.pop %v373
    %v375 = vmul.f32 %v374, 0.6931472
    %v376 = vsub.f32 %v369, %v375
    %vm377 = vcmask 80896
    %378 = vst.msk [vmem:[#allocation8] sm:$0xff] %vm377, %v376
    // Predicated region
    $region42: #{ffnn_forward.1} parent=1 // pred_check
      _
    $region43: #{ffnn_forward.1} parent=1 // pred_check_branch
      %380 = sbr.rel (0) target = $region45
    $region44: #{ffnn_forward.1} parent=1 // pred_region
      %s382 = ssub.s32 128, 128
      %383 = vsyncadd [#allocation4], %s382
      %s385 = sshll.u32 [#allocation8], 4
      %s386 = int_to_ptr.vmem [resolvable:$true] %s385
      %388 = dma.vmem_to_hbm [thread:$0]  %s386, 128, %s7, [#allocation4]
    $region45: #{ffnn_forward.1} parent=1 // pred_fallthru
      _
    // Predicated region
    $region46: #{ffnn_forward.1} parent=1 // pred_check
      _
    $region47: #{ffnn_forward.1} parent=1 // pred_check_branch
      %390 = sbr.rel (0) target = $region49
    $region48: #{ffnn_forward.1} parent=1 // pred_region
      %391 = dma.done [#allocation4], 128
    $region49: #{ffnn_forward.1} parent=1 // pred_fallthru
      _
    %392 = vsyncpa [#allocation3], 1
    %393 = vsyncpa [#allocation6], 1
    %394 = vsyncpa [#allocation4], 1

</llo_original>
